<compile_context>
chip_gen: v6e
topology: v6e:2x2x1
jax: 0.10.0
libtpu: 0.0.40
codegen_flags: <defaults>
</compile_context>

<pallas_src>
import functools

import jax
import jax.numpy as jnp
from jax.experimental import pallas as pl
from jax.experimental.pallas import tpu as pltpu

_BN_EPS = 1e-5


# ----------------------------------------------------------------------------
# Fused Pallas kernel (one block = nb images, flat & lane-dense)
# ----------------------------------------------------------------------------
def _double_conv_kernel(x_ref, mask_ref, w1_ref, b1_ref, s1_ref, t1_ref,
                        wdw_ref, b2_ref, s2_ref, t2_ref, o_ref, *, shifts):
    """DoubleConvBlock on flat, lane-dense activations.

    Shapes (Mb = images_per_block * H * W, spatial on the lane axis):
      x_ref    : (Cin,  Mb)     input block
      mask_ref : (9,    Mb)     {0,1} validity mask per 3x3 tap (SAME padding)
      w1_ref   : (Cout, 9*Cin)  conv1 weights, im2col layout (tap-major)
      b1/s1/t1 : (Cout, 1)      conv1 bias, BN1 scale, BN1 shift (eval mode)
      wdw_ref  : (Cout, 9)      depthwise conv2 weights (3x3 taps per channel)
      b2/s2/t2 : (Cout, 1)      conv2 bias, BN2 scale, BN2 shift (eval mode)
      o_ref    : (Cout, Mb)     output block

    shifts[t] is the static flat-index offset of tap t; a lane-roll of the
    flat activation by -shifts[t] multiplied by mask[t] is exactly the
    zero-padded shifted patch (the mask kills row/image wrap-around).
    """
    x = x_ref[...]                                           # (Cin, Mb)
    masks = mask_ref[...]                                    # (9,   Mb)

    # ---- conv1: im2col (9 masked lane-rolls) + one MXU matmul, K = 9*Cin ----
    cols = []
    for tap, sh in enumerate(shifts):
        rolled = x if sh == 0 else jnp.roll(x, -sh, axis=-1)
        cols.append(rolled * masks[tap:tap + 1, :])          # (Cin, Mb)
    col = jnp.concatenate(cols, axis=0)                      # (9*Cin, Mb)
    y = jnp.dot(w1_ref[...], col,
                preferred_element_type=jnp.float32)          # (Cout, Mb)
    y = y + b1_ref[...]                                      # conv1 bias
    y = jnp.maximum(y, 0.0)                                  # ReLU
    y = y * s1_ref[...] + t1_ref[...]                        # BatchNorm1 (eval)

    # ---- conv2 (depthwise, groups=Cout): 9 masked rolls * per-channel wts ----
    w_dw = wdw_ref[...]                                      # (Cout, 9)
    acc = jnp.zeros_like(y)                                  # (Cout, Mb) f32
    for tap, sh in enumerate(shifts):
        rolled = y if sh == 0 else jnp.roll(y, -sh, axis=-1)
        acc = acc + w_dw[:, tap:tap + 1] * (rolled * masks[tap:tap + 1, :])
    acc = acc + b2_ref[...]                                  # conv2 bias
    acc = jnp.maximum(acc, 0.0)                              # ReLU
    acc = acc * s2_ref[...] + t2_ref[...]                    # BatchNorm2 (eval)

    o_ref[...] = acc.astype(o_ref.dtype)                     # full-lane store


# ----------------------------------------------------------------------------
# Host-side helpers
# ----------------------------------------------------------------------------
def _tap_masks_and_shifts(images_per_block, H, W):
    """Per-tap flat-index shifts and {0,1} validity masks for a SAME 3x3 conv."""
    hh = jnp.arange(H)
    ww = jnp.arange(W)
    masks, shifts = [], []
    for dy in range(3):
        for dx in range(3):
            oy, ox = dy - 1, dx - 1
            mh = ((hh + oy) >= 0) & ((hh + oy) < H)                 # (H,)
            mw = ((ww + ox) >= 0) & ((ww + ox) < W)                 # (W,)
            m2 = (mh[:, None] & mw[None, :]).astype(jnp.float32)    # (H, W)
            masks.append(jnp.tile(m2.reshape(-1), images_per_block))
            shifts.append(oy * W + ox)
    return jnp.stack(masks, axis=0), tuple(shifts)


def _pick_images_per_block(N, H, W, max_lanes=8192):
    """Largest divisor of N whose block keeps the lane dim <= max_lanes.

    Falls back to the whole batch (single block) when H*W is not a multiple of
    128 so the lane dim equals the full array extent (tiling rule).
    """
    hw = H * W
    if hw % 128 != 0:
        return N
    nb = 1
    for cand in range(1, N + 1):
        if N % cand == 0 and cand * hw <= max_lanes:
            nb = cand
    return nb


def double_conv_block(x_nchw, params, *, padding=True, batch_norm=True):
    """Forward pass of DoubleConvBlock. x: (N, Cin, H, W) f32 -> NCHW output.

    BatchNorm is applied in eval mode (running statistics), folded to a
    per-channel affine that runs after each ReLU inside the fused kernel.
    """
    # TODO(synk): training-mode BatchNorm (batch statistics + running-stat
    # updates) is not implemented; eval-mode running stats are used.
    N, Cin, H, W = x_nchw.shape
    w1 = params["w1"]                                    # (Cout, Cin, 3, 3)
    Cout = w1.shape[0]
    M = N * H * W

    def bn_affine(bn):
        if bn is None:
            return (jnp.ones((Cout, 1), jnp.float32),
                    jnp.zeros((Cout, 1), jnp.float32))
        gamma, beta, mean, var = bn
        s = gamma / jnp.sqrt(var + _BN_EPS)
        return (s.reshape(Cout, 1).astype(jnp.float32),
                (beta - mean * s).reshape(Cout, 1).astype(jnp.float32))

    s1, t1 = bn_affine(params["bn1"] if batch_norm else None)
    s2, t2 = bn_affine(params["bn2"] if batch_norm else None)

    # conv1 weights in im2col layout: column = tap*Cin + ci, taps in the same
    # (dy, dx) row-major order as `shifts` / `masks`.
    w1_mat = jnp.transpose(w1, (0, 2, 3, 1)).reshape(Cout, 9 * Cin)
    w1_mat = w1_mat.astype(jnp.float32)
    wdw_mat = params["w2"].reshape(Cout, 9).astype(jnp.float32)   # (Cout,1,3,3)
    b1 = params["b1"].reshape(Cout, 1).astype(jnp.float32)
    b2 = params["b2"].reshape(Cout, 1).astype(jnp.float32)

    nb = _pick_images_per_block(N, H, W)
    mb = nb * H * W
    grid = (N // nb,)
    masks, shifts = _tap_masks_and_shifts(nb, H, W)

    # Boundary layout op: NCHW -> (Cin, N*H*W); spatial goes on the lane axis.
    x_flat = jnp.transpose(x_nchw, (1, 0, 2, 3)).reshape(Cin, M)
    x_flat = x_flat.astype(jnp.float32)

    kernel = functools.partial(_double_conv_kernel, shifts=shifts)
    const2 = lambda n: (0, 0)   # parameters / masks: same block every step

    out_flat = pl.pallas_call(
        kernel,
        out_shape=jax.ShapeDtypeStruct((Cout, M), jnp.float32),
        grid=grid,
        in_specs=[
            pl.BlockSpec((Cin, mb), lambda n: (0, n)),      # x block
            pl.BlockSpec((9, mb), const2),                  # tap masks
            pl.BlockSpec((Cout, 9 * Cin), const2),          # conv1 weights
            pl.BlockSpec((Cout, 1), const2),                # b1
            pl.BlockSpec((Cout, 1), const2),                # bn1 scale
            pl.BlockSpec((Cout, 1), const2),                # bn1 shift
            pl.BlockSpec((Cout, 9), const2),                # depthwise weights
            pl.BlockSpec((Cout, 1), const2),                # b2
            pl.BlockSpec((Cout, 1), const2),                # bn2 scale
            pl.BlockSpec((Cout, 1), const2),                # bn2 shift
        ],
        out_specs=pl.BlockSpec((Cout, mb), lambda n: (0, n)),
        compiler_params=pltpu.CompilerParams(
            dimension_semantics=("parallel",)),
    )(x_flat, masks, w1_mat, b1, s1, t1, wdw_mat, b2, s2, t2)

    out = jnp.transpose(out_flat.reshape(Cout, N, H, W), (1, 0, 2, 3))  # NCHW
    if not int(padding):
        # padding=0 (two VALID convs): the interior of the SAME-computed chain
        # is exactly the valid-conv chain; crop 2 pixels per side.
        out = out[:, :, 2:H - 2, 2:W - 2]
    return out


# ----------------------------------------------------------------------------
# Deterministic parameters (PyTorch module shapes) and pure-JAX reference
# ----------------------------------------------------------------------------
def make_params(key, in_size, out_size):
    k = jax.random.split(key, 6)
    w1 = jax.random.normal(k[0], (out_size, in_size, 3, 3), jnp.float32) \
        * (2.0 / (in_size * 9)) ** 0.5
    b1 = 0.05 * jax.random.normal(k[1], (out_size,), jnp.float32)
    w2 = jax.random.normal(k[2], (out_size, 1, 3, 3), jnp.float32) \
        * (2.0 / 9) ** 0.5
    b2 = 0.05 * jax.random.normal(k[3], (out_size,), jnp.float32)

    def bn(kk):
        kg, kb, km, kv = jax.random.split(kk, 4)
        gamma = 1.0 + 0.2 * jax.random.normal(kg, (out_size,), jnp.float32)
        beta = 0.1 * jax.random.normal(kb, (out_size,), jnp.float32)
        mean = 0.1 * jax.random.normal(km, (out_size,), jnp.float32)
        var = jax.random.uniform(kv, (out_size,), jnp.float32, 0.5, 1.5)
        return (gamma, beta, mean, var)

    return {"w1": w1, "b1": b1, "bn1": bn(k[4]),
            "w2": w2, "b2": b2, "bn2": bn(k[5])}


def double_conv_block_reference(x, params, *, padding=True, batch_norm=True):
    p = int(padding)
    hi = jax.lax.Precision.HIGHEST

    def bn_apply(y, bn):
        gamma, beta, mean, var = bn
        yc = (y - mean[None, :, None, None]) \
            / jnp.sqrt(var + _BN_EPS)[None, :, None, None]
        return yc * gamma[None, :, None, None] + beta[None, :, None, None]

    y = jax.lax.conv_general_dilated(
        x, params["w1"], (1, 1), [(p, p), (p, p)],
        dimension_numbers=("NCHW", "OIHW", "NCHW"), precision=hi)
    y = y + params["b1"][None, :, None, None]
    y = jnp.maximum(y, 0.0)
    if batch_norm:
        y = bn_apply(y, params["bn1"])
    y = jax.lax.conv_general_dilated(
        y, params["w2"], (1, 1), [(p, p), (p, p)],
        dimension_numbers=("NCHW", "OIHW", "NCHW"),
        feature_group_count=params["w2"].shape[0], precision=hi)
    y = y + params["b2"][None, :, None, None]
    y = jnp.maximum(y, 0.0)
    if batch_norm:
        y = bn_apply(y, params["bn2"])
    return y


if __name__ == "__main__":
    key = jax.random.PRNGKey(0)
    kx, kp = jax.random.split(key)
    N, Cin, Cout, H, W = 2, 4, 8, 16, 16

    x = jax.random.normal(kx, (N, Cin, H, W), jnp.float32)
    params = make_params(kp, Cin, Cout)

    for padding, batch_norm in ((True, True), (False, False)):
        fwd = jax.jit(functools.partial(double_conv_block,
                                        padding=padding,
                                        batch_norm=batch_norm))
        out = jax.block_until_ready(fwd(x, params))
        ref = double_conv_block_reference(x, params, padding=padding,
                                          batch_norm=batch_norm)
        assert out.shape == ref.shape, (out.shape, ref.shape)
        max_err = float(jnp.max(jnp.abs(out - ref)))
        assert jnp.allclose(out, ref, rtol=1e-5, atol=1e-5), max_err

    print("KERNEL_OK")
</pallas_src>

<mosaic_0001>
module attributes {stable_mosaic.version = 11 : i64} {
  func.func @_double_conv_kernel(%arg0: i32, %arg1: memref<4x512xf32, #tpu.memory_space<vmem>>, %arg2: memref<9x512xf32, #tpu.memory_space<vmem>>, %arg3: memref<8x36xf32, #tpu.memory_space<vmem>>, %arg4: memref<8x1xf32, #tpu.memory_space<vmem>>, %arg5: memref<8x1xf32, #tpu.memory_space<vmem>>, %arg6: memref<8x1xf32, #tpu.memory_space<vmem>>, %arg7: memref<8x9xf32, #tpu.memory_space<vmem>>, %arg8: memref<8x1xf32, #tpu.memory_space<vmem>>, %arg9: memref<8x1xf32, #tpu.memory_space<vmem>>, %arg10: memref<8x1xf32, #tpu.memory_space<vmem>>, %arg11: memref<8x512xf32, #tpu.memory_space<vmem>>) attributes {dimension_semantics = [#tpu.dimension_semantics<parallel>], iteration_bounds = array<i64: 1>, scalar_prefetch = 0 : i64, scratch_operands = 0 : i64, tpu.core_type = #tpu.core_type<tc>, window_params = [{transform_indices = @transform_0, window_bounds = array<i64: 4, 512>}, {pipeline_mode = #tpu.pipeline_mode<synchronous>, transform_indices = @transform_1, window_bounds = array<i64: 9, 512>}, {pipeline_mode = #tpu.pipeline_mode<synchronous>, transform_indices = @transform_2, window_bounds = array<i64: 8, 36>}, {pipeline_mode = #tpu.pipeline_mode<synchronous>, transform_indices = @transform_3, window_bounds = array<i64: 8, 1>}, {pipeline_mode = #tpu.pipeline_mode<synchronous>, transform_indices = @transform_4, window_bounds = array<i64: 8, 1>}, {pipeline_mode = #tpu.pipeline_mode<synchronous>, transform_indices = @transform_5, window_bounds = array<i64: 8, 1>}, {pipeline_mode = #tpu.pipeline_mode<synchronous>, transform_indices = @transform_6, window_bounds = array<i64: 8, 9>}, {pipeline_mode = #tpu.pipeline_mode<synchronous>, transform_indices = @transform_7, window_bounds = array<i64: 8, 1>}, {pipeline_mode = #tpu.pipeline_mode<synchronous>, transform_indices = @transform_8, window_bounds = array<i64: 8, 1>}, {pipeline_mode = #tpu.pipeline_mode<synchronous>, transform_indices = @transform_9, window_bounds = array<i64: 8, 1>}, {transform_indices = @transform_10, window_bounds = array<i64: 8, 512>}]} {
    %c0 = arith.constant 0 : index
    %c0_0 = arith.constant 0 : index
    %0 = vector.load %arg1[%c0, %c0_0] : memref<4x512xf32, #tpu.memory_space<vmem>>, vector<4x512xf32>
    %c0_1 = arith.constant 0 : index
    %c0_2 = arith.constant 0 : index
    %1 = vector.load %arg2[%c0_1, %c0_2] : memref<9x512xf32, #tpu.memory_space<vmem>>, vector<9x512xf32>
    %2 = vector.extract_strided_slice %0 {offsets = [0, 495], sizes = [4, 17], strides = [1, 1]} : vector<4x512xf32> to vector<4x17xf32>
    %3 = vector.extract_strided_slice %0 {offsets = [0, 0], sizes = [4, 495], strides = [1, 1]} : vector<4x512xf32> to vector<4x495xf32>
    %4 = tpu.concatenate %2, %3 in 1 : vector<4x17xf32>, vector<4x495xf32> -> vector<4x512xf32>
    %5 = vector.extract_strided_slice %1 {offsets = [0, 0], sizes = [1, 512], strides = [1, 1]} : vector<9x512xf32> to vector<1x512xf32>
    %6 = vector.broadcast %5 : vector<1x512xf32> to vector<4x512xf32>
    %7 = arith.mulf %4, %6 : vector<4x512xf32>
    %8 = vector.extract_strided_slice %0 {offsets = [0, 496], sizes = [4, 16], strides = [1, 1]} : vector<4x512xf32> to vector<4x16xf32>
    %9 = vector.extract_strided_slice %0 {offsets = [0, 0], sizes = [4, 496], strides = [1, 1]} : vector<4x512xf32> to vector<4x496xf32>
    %10 = tpu.concatenate %8, %9 in 1 : vector<4x16xf32>, vector<4x496xf32> -> vector<4x512xf32>
    %11 = vector.extract_strided_slice %1 {offsets = [1, 0], sizes = [1, 512], strides = [1, 1]} : vector<9x512xf32> to vector<1x512xf32>
    %12 = vector.broadcast %11 : vector<1x512xf32> to vector<4x512xf32>
    %13 = arith.mulf %10, %12 : vector<4x512xf32>
    %14 = vector.extract_strided_slice %0 {offsets = [0, 497], sizes = [4, 15], strides = [1, 1]} : vector<4x512xf32> to vector<4x15xf32>
    %15 = vector.extract_strided_slice %0 {offsets = [0, 0], sizes = [4, 497], strides = [1, 1]} : vector<4x512xf32> to vector<4x497xf32>
    %16 = tpu.concatenate %14, %15 in 1 : vector<4x15xf32>, vector<4x497xf32> -> vector<4x512xf32>
    %17 = vector.extract_strided_slice %1 {offsets = [2, 0], sizes = [1, 512], strides = [1, 1]} : vector<9x512xf32> to vector<1x512xf32>
    %18 = vector.broadcast %17 : vector<1x512xf32> to vector<4x512xf32>
    %19 = arith.mulf %16, %18 : vector<4x512xf32>
    %20 = vector.extract_strided_slice %0 {offsets = [0, 511], sizes = [4, 1], strides = [1, 1]} : vector<4x512xf32> to vector<4x1xf32>
    %21 = vector.extract_strided_slice %0 {offsets = [0, 0], sizes = [4, 511], strides = [1, 1]} : vector<4x512xf32> to vector<4x511xf32>
    %22 = tpu.concatenate %20, %21 in 1 : vector<4x1xf32>, vector<4x511xf32> -> vector<4x512xf32>
    %23 = vector.extract_strided_slice %1 {offsets = [3, 0], sizes = [1, 512], strides = [1, 1]} : vector<9x512xf32> to vector<1x512xf32>
    %24 = vector.broadcast %23 : vector<1x512xf32> to vector<4x512xf32>
    %25 = arith.mulf %22, %24 : vector<4x512xf32>
    %26 = vector.extract_strided_slice %1 {offsets = [4, 0], sizes = [1, 512], strides = [1, 1]} : vector<9x512xf32> to vector<1x512xf32>
    %27 = vector.broadcast %26 : vector<1x512xf32> to vector<4x512xf32>
    %28 = arith.mulf %0, %27 : vector<4x512xf32>
    %29 = vector.extract_strided_slice %0 {offsets = [0, 1], sizes = [4, 511], strides = [1, 1]} : vector<4x512xf32> to vector<4x511xf32>
    %30 = vector.extract_strided_slice %0 {offsets = [0, 0], sizes = [4, 1], strides = [1, 1]} : vector<4x512xf32> to vector<4x1xf32>
    %31 = tpu.concatenate %29, %30 in 1 : vector<4x511xf32>, vector<4x1xf32> -> vector<4x512xf32>
    %32 = vector.extract_strided_slice %1 {offsets = [5, 0], sizes = [1, 512], strides = [1, 1]} : vector<9x512xf32> to vector<1x512xf32>
    %33 = vector.broadcast %32 : vector<1x512xf32> to vector<4x512xf32>
    %34 = arith.mulf %31, %33 : vector<4x512xf32>
    %35 = vector.extract_strided_slice %0 {offsets = [0, 15], sizes = [4, 497], strides = [1, 1]} : vector<4x512xf32> to vector<4x497xf32>
    %36 = vector.extract_strided_slice %0 {offsets = [0, 0], sizes = [4, 15], strides = [1, 1]} : vector<4x512xf32> to vector<4x15xf32>
    %37 = tpu.concatenate %35, %36 in 1 : vector<4x497xf32>, vector<4x15xf32> -> vector<4x512xf32>
    %38 = vector.extract_strided_slice %1 {offsets = [6, 0], sizes = [1, 512], strides = [1, 1]} : vector<9x512xf32> to vector<1x512xf32>
    %39 = vector.broadcast %38 : vector<1x512xf32> to vector<4x512xf32>
    %40 = arith.mulf %37, %39 : vector<4x512xf32>
    %41 = vector.extract_strided_slice %0 {offsets = [0, 16], sizes = [4, 496], strides = [1, 1]} : vector<4x512xf32> to vector<4x496xf32>
    %42 = vector.extract_strided_slice %0 {offsets = [0, 0], sizes = [4, 16], strides = [1, 1]} : vector<4x512xf32> to vector<4x16xf32>
    %43 = tpu.concatenate %41, %42 in 1 : vector<4x496xf32>, vector<4x16xf32> -> vector<4x512xf32>
    %44 = vector.extract_strided_slice %1 {offsets = [7, 0], sizes = [1, 512], strides = [1, 1]} : vector<9x512xf32> to vector<1x512xf32>
    %45 = vector.broadcast %44 : vector<1x512xf32> to vector<4x512xf32>
    %46 = arith.mulf %43, %45 : vector<4x512xf32>
    %47 = vector.extract_strided_slice %0 {offsets = [0, 17], sizes = [4, 495], strides = [1, 1]} : vector<4x512xf32> to vector<4x495xf32>
    %48 = vector.extract_strided_slice %0 {offsets = [0, 0], sizes = [4, 17], strides = [1, 1]} : vector<4x512xf32> to vector<4x17xf32>
    %49 = tpu.concatenate %47, %48 in 1 : vector<4x495xf32>, vector<4x17xf32> -> vector<4x512xf32>
    %50 = vector.extract_strided_slice %1 {offsets = [8, 0], sizes = [1, 512], strides = [1, 1]} : vector<9x512xf32> to vector<1x512xf32>
    %51 = vector.broadcast %50 : vector<1x512xf32> to vector<4x512xf32>
    %52 = arith.mulf %49, %51 : vector<4x512xf32>
    %53 = tpu.concatenate %7, %13, %19, %25, %28, %34, %40, %46, %52 in 0 : vector<4x512xf32>, vector<4x512xf32>, vector<4x512xf32>, vector<4x512xf32>, vector<4x512xf32>, vector<4x512xf32>, vector<4x512xf32>, vector<4x512xf32>, vector<4x512xf32> -> vector<36x512xf32>
    %c0_3 = arith.constant 0 : index
    %c0_4 = arith.constant 0 : index
    %54 = vector.load %arg3[%c0_3, %c0_4] : memref<8x36xf32, #tpu.memory_space<vmem>>, vector<8x36xf32>
    %cst = arith.constant dense<0.000000e+00> : vector<8x512xf32>
    %55 = tpu.matmul %54, %53, %cst {dimension_numbers = #tpu.dot_dimension_numbers<[1], [0], [0], [1], [0, 0, 1, 1], [], []>} : vector<8x36xf32>, vector<36x512xf32>, vector<8x512xf32> -> vector<8x512xf32>
    %c0_5 = arith.constant 0 : index
    %c0_6 = arith.constant 0 : index
    %56 = vector.load %arg4[%c0_5, %c0_6] : memref<8x1xf32, #tpu.memory_space<vmem>>, vector<8x1xf32>
    %57 = vector.broadcast %56 : vector<8x1xf32> to vector<8x512xf32>
    %58 = arith.addf %55, %57 : vector<8x512xf32>
    %cst_7 = arith.constant 0.000000e+00 : f32
    %59 = vector.broadcast %cst_7 : f32 to vector<8x512xf32>
    %60 = arith.maximumf %58, %59 : vector<8x512xf32>
    %c0_8 = arith.constant 0 : index
    %c0_9 = arith.constant 0 : index
    %61 = vector.load %arg5[%c0_8, %c0_9] : memref<8x1xf32, #tpu.memory_space<vmem>>, vector<8x1xf32>
    %62 = vector.broadcast %61 : vector<8x1xf32> to vector<8x512xf32>
    %63 = arith.mulf %60, %62 : vector<8x512xf32>
    %c0_10 = arith.constant 0 : index
    %c0_11 = arith.constant 0 : index
    %64 = vector.load %arg6[%c0_10, %c0_11] : memref<8x1xf32, #tpu.memory_space<vmem>>, vector<8x1xf32>
    %65 = vector.broadcast %64 : vector<8x1xf32> to vector<8x512xf32>
    %66 = arith.addf %63, %65 : vector<8x512xf32>
    %c0_12 = arith.constant 0 : index
    %c0_13 = arith.constant 0 : index
    %67 = vector.load %arg7[%c0_12, %c0_13] : memref<8x9xf32, #tpu.memory_space<vmem>>, vector<8x9xf32>
    %cst_14 = arith.constant 0.000000e+00 : f32
    %68 = vector.broadcast %cst_14 : f32 to vector<8x512xf32>
    %69 = vector.extract_strided_slice %66 {offsets = [0, 495], sizes = [8, 17], strides = [1, 1]} : vector<8x512xf32> to vector<8x17xf32>
    %70 = vector.extract_strided_slice %66 {offsets = [0, 0], sizes = [8, 495], strides = [1, 1]} : vector<8x512xf32> to vector<8x495xf32>
    %71 = tpu.concatenate %69, %70 in 1 : vector<8x17xf32>, vector<8x495xf32> -> vector<8x512xf32>
    %72 = vector.extract_strided_slice %67 {offsets = [0, 0], sizes = [8, 1], strides = [1, 1]} : vector<8x9xf32> to vector<8x1xf32>
    %73 = vector.extract_strided_slice %1 {offsets = [0, 0], sizes = [1, 512], strides = [1, 1]} : vector<9x512xf32> to vector<1x512xf32>
    %74 = vector.broadcast %73 : vector<1x512xf32> to vector<8x512xf32>
    %75 = arith.mulf %71, %74 : vector<8x512xf32>
    %76 = vector.broadcast %72 : vector<8x1xf32> to vector<8x512xf32>
    %77 = arith.mulf %76, %75 : vector<8x512xf32>
    %78 = arith.addf %68, %77 : vector<8x512xf32>
    %79 = vector.extract_strided_slice %66 {offsets = [0, 496], sizes = [8, 16], strides = [1, 1]} : vector<8x512xf32> to vector<8x16xf32>
    %80 = vector.extract_strided_slice %66 {offsets = [0, 0], sizes = [8, 496], strides = [1, 1]} : vector<8x512xf32> to vector<8x496xf32>
    %81 = tpu.concatenate %79, %80 in 1 : vector<8x16xf32>, vector<8x496xf32> -> vector<8x512xf32>
    %82 = vector.extract_strided_slice %67 {offsets = [0, 1], sizes = [8, 1], strides = [1, 1]} : vector<8x9xf32> to vector<8x1xf32>
    %83 = vector.extract_strided_slice %1 {offsets = [1, 0], sizes = [1, 512], strides = [1, 1]} : vector<9x512xf32> to vector<1x512xf32>
    %84 = vector.broadcast %83 : vector<1x512xf32> to vector<8x512xf32>
    %85 = arith.mulf %81, %84 : vector<8x512xf32>
    %86 = vector.broadcast %82 : vector<8x1xf32> to vector<8x512xf32>
    %87 = arith.mulf %86, %85 : vector<8x512xf32>
    %88 = arith.addf %78, %87 : vector<8x512xf32>
    %89 = vector.extract_strided_slice %66 {offsets = [0, 497], sizes = [8, 15], strides = [1, 1]} : vector<8x512xf32> to vector<8x15xf32>
    %90 = vector.extract_strided_slice %66 {offsets = [0, 0], sizes = [8, 497], strides = [1, 1]} : vector<8x512xf32> to vector<8x497xf32>
    %91 = tpu.concatenate %89, %90 in 1 : vector<8x15xf32>, vector<8x497xf32> -> vector<8x512xf32>
    %92 = vector.extract_strided_slice %67 {offsets = [0, 2], sizes = [8, 1], strides = [1, 1]} : vector<8x9xf32> to vector<8x1xf32>
    %93 = vector.extract_strided_slice %1 {offsets = [2, 0], sizes = [1, 512], strides = [1, 1]} : vector<9x512xf32> to vector<1x512xf32>
    %94 = vector.broadcast %93 : vector<1x512xf32> to vector<8x512xf32>
    %95 = arith.mulf %91, %94 : vector<8x512xf32>
    %96 = vector.broadcast %92 : vector<8x1xf32> to vector<8x512xf32>
    %97 = arith.mulf %96, %95 : vector<8x512xf32>
    %98 = arith.addf %88, %97 : vector<8x512xf32>
    %99 = vector.extract_strided_slice %66 {offsets = [0, 511], sizes = [8, 1], strides = [1, 1]} : vector<8x512xf32> to vector<8x1xf32>
    %100 = vector.extract_strided_slice %66 {offsets = [0, 0], sizes = [8, 511], strides = [1, 1]} : vector<8x512xf32> to vector<8x511xf32>
    %101 = tpu.concatenate %99, %100 in 1 : vector<8x1xf32>, vector<8x511xf32> -> vector<8x512xf32>
    %102 = vector.extract_strided_slice %67 {offsets = [0, 3], sizes = [8, 1], strides = [1, 1]} : vector<8x9xf32> to vector<8x1xf32>
    %103 = vector.extract_strided_slice %1 {offsets = [3, 0], sizes = [1, 512], strides = [1, 1]} : vector<9x512xf32> to vector<1x512xf32>
    %104 = vector.broadcast %103 : vector<1x512xf32> to vector<8x512xf32>
    %105 = arith.mulf %101, %104 : vector<8x512xf32>
    %106 = vector.broadcast %102 : vector<8x1xf32> to vector<8x512xf32>
    %107 = arith.mulf %106, %105 : vector<8x512xf32>
    %108 = arith.addf %98, %107 : vector<8x512xf32>
    %109 = vector.extract_strided_slice %67 {offsets = [0, 4], sizes = [8, 1], strides = [1, 1]} : vector<8x9xf32> to vector<8x1xf32>
    %110 = vector.extract_strided_slice %1 {offsets = [4, 0], sizes = [1, 512], strides = [1, 1]} : vector<9x512xf32> to vector<1x512xf32>
    %111 = vector.broadcast %110 : vector<1x512xf32> to vector<8x512xf32>
    %112 = arith.mulf %66, %111 : vector<8x512xf32>
    %113 = vector.broadcast %109 : vector<8x1xf32> to vector<8x512xf32>
    %114 = arith.mulf %113, %112 : vector<8x512xf32>
    %115 = arith.addf %108, %114 : vector<8x512xf32>
    %116 = vector.extract_strided_slice %66 {offsets = [0, 1], sizes = [8, 511], strides = [1, 1]} : vector<8x512xf32> to vector<8x511xf32>
    %117 = vector.extract_strided_slice %66 {offsets = [0, 0], sizes = [8, 1], strides = [1, 1]} : vector<8x512xf32> to vector<8x1xf32>
    %118 = tpu.concatenate %116, %117 in 1 : vector<8x511xf32>, vector<8x1xf32> -> vector<8x512xf32>
    %119 = vector.extract_strided_slice %67 {offsets = [0, 5], sizes = [8, 1], strides = [1, 1]} : vector<8x9xf32> to vector<8x1xf32>
    %120 = vector.extract_strided_slice %1 {offsets = [5, 0], sizes = [1, 512], strides = [1, 1]} : vector<9x512xf32> to vector<1x512xf32>
    %121 = vector.broadcast %120 : vector<1x512xf32> to vector<8x512xf32>
    %122 = arith.mulf %118, %121 : vector<8x512xf32>
    %123 = vector.broadcast %119 : vector<8x1xf32> to vector<8x512xf32>
    %124 = arith.mulf %123, %122 : vector<8x512xf32>
    %125 = arith.addf %115, %124 : vector<8x512xf32>
    %126 = vector.extract_strided_slice %66 {offsets = [0, 15], sizes = [8, 497], strides = [1, 1]} : vector<8x512xf32> to vector<8x497xf32>
    %127 = vector.extract_strided_slice %66 {offsets = [0, 0], sizes = [8, 15], strides = [1, 1]} : vector<8x512xf32> to vector<8x15xf32>
    %128 = tpu.concatenate %126, %127 in 1 : vector<8x497xf32>, vector<8x15xf32> -> vector<8x512xf32>
    %129 = vector.extract_strided_slice %67 {offsets = [0, 6], sizes = [8, 1], strides = [1, 1]} : vector<8x9xf32> to vector<8x1xf32>
    %130 = vector.extract_strided_slice %1 {offsets = [6, 0], sizes = [1, 512], strides = [1, 1]} : vector<9x512xf32> to vector<1x512xf32>
    %131 = vector.broadcast %130 : vector<1x512xf32> to vector<8x512xf32>
    %132 = arith.mulf %128, %131 : vector<8x512xf32>
    %133 = vector.broadcast %129 : vector<8x1xf32> to vector<8x512xf32>
    %134 = arith.mulf %133, %132 : vector<8x512xf32>
    %135 = arith.addf %125, %134 : vector<8x512xf32>
    %136 = vector.extract_strided_slice %66 {offsets = [0, 16], sizes = [8, 496], strides = [1, 1]} : vector<8x512xf32> to vector<8x496xf32>
    %137 = vector.extract_strided_slice %66 {offsets = [0, 0], sizes = [8, 16], strides = [1, 1]} : vector<8x512xf32> to vector<8x16xf32>
    %138 = tpu.concatenate %136, %137 in 1 : vector<8x496xf32>, vector<8x16xf32> -> vector<8x512xf32>
    %139 = vector.extract_strided_slice %67 {offsets = [0, 7], sizes = [8, 1], strides = [1, 1]} : vector<8x9xf32> to vector<8x1xf32>
    %140 = vector.extract_strided_slice %1 {offsets = [7, 0], sizes = [1, 512], strides = [1, 1]} : vector<9x512xf32> to vector<1x512xf32>
    %141 = vector.broadcast %140 : vector<1x512xf32> to vector<8x512xf32>
    %142 = arith.mulf %138, %141 : vector<8x512xf32>
    %143 = vector.broadcast %139 : vector<8x1xf32> to vector<8x512xf32>
    %144 = arith.mulf %143, %142 : vector<8x512xf32>
    %145 = arith.addf %135, %144 : vector<8x512xf32>
    %146 = vector.extract_strided_slice %66 {offsets = [0, 17], sizes = [8, 495], strides = [1, 1]} : vector<8x512xf32> to vector<8x495xf32>
    %147 = vector.extract_strided_slice %66 {offsets = [0, 0], sizes = [8, 17], strides = [1, 1]} : vector<8x512xf32> to vector<8x17xf32>
    %148 = tpu.concatenate %146, %147 in 1 : vector<8x495xf32>, vector<8x17xf32> -> vector<8x512xf32>
    %149 = vector.extract_strided_slice %67 {offsets = [0, 8], sizes = [8, 1], strides = [1, 1]} : vector<8x9xf32> to vector<8x1xf32>
    %150 = vector.extract_strided_slice %1 {offsets = [8, 0], sizes = [1, 512], strides = [1, 1]} : vector<9x512xf32> to vector<1x512xf32>
    %151 = vector.broadcast %150 : vector<1x512xf32> to vector<8x512xf32>
    %152 = arith.mulf %148, %151 : vector<8x512xf32>
    %153 = vector.broadcast %149 : vector<8x1xf32> to vector<8x512xf32>
    %154 = arith.mulf %153, %152 : vector<8x512xf32>
    %155 = arith.addf %145, %154 : vector<8x512xf32>
    %c0_15 = arith.constant 0 : index
    %c0_16 = arith.constant 0 : index
    %156 = vector.load %arg8[%c0_15, %c0_16] : memref<8x1xf32, #tpu.memory_space<vmem>>, vector<8x1xf32>
    %157 = vector.broadcast %156 : vector<8x1xf32> to vector<8x512xf32>
    %158 = arith.addf %155, %157 : vector<8x512xf32>
    %cst_17 = arith.constant 0.000000e+00 : f32
    %159 = vector.broadcast %cst_17 : f32 to vector<8x512xf32>
    %160 = arith.maximumf %158, %159 : vector<8x512xf32>
    %c0_18 = arith.constant 0 : index
    %c0_19 = arith.constant 0 : index
    %161 = vector.load %arg9[%c0_18, %c0_19] : memref<8x1xf32, #tpu.memory_space<vmem>>, vector<8x1xf32>
    %162 = vector.broadcast %161 : vector<8x1xf32> to vector<8x512xf32>
    %163 = arith.mulf %160, %162 : vector<8x512xf32>
    %c0_20 = arith.constant 0 : index
    %c0_21 = arith.constant 0 : index
    %164 = vector.load %arg10[%c0_20, %c0_21] : memref<8x1xf32, #tpu.memory_space<vmem>>, vector<8x1xf32>
    %165 = vector.broadcast %164 : vector<8x1xf32> to vector<8x512xf32>
    %166 = arith.addf %163, %165 : vector<8x512xf32>
    %c0_22 = arith.constant 0 : index
    %c0_23 = arith.constant 0 : index
    %167 = vector.load %arg11[%c0_22, %c0_23] : memref<8x512xf32, #tpu.memory_space<vmem>>, vector<8x512xf32>
    tpu.vector_store %arg11[%c0_22, %c0_23], %166 {strides = array<i32>} : memref<8x512xf32, #tpu.memory_space<vmem>>, vector<8x512xf32>,
    return
  }
  func.func @transform_0(%arg0: i32) -> (i32, i32) {
    %c0_i32 = arith.constant 0 : i32
    %c0_i32_0 = arith.constant 0 : i32
    return %c0_i32, %arg0 : i32, i32
  }
  func.func @transform_1(%arg0: i32) -> (i32, i32) {
    %c0_i32 = arith.constant 0 : i32
    %c0_i32_0 = arith.constant 0 : i32
    %c0_i32_1 = arith.constant 0 : i32
    return %c0_i32, %c0_i32_0 : i32, i32
  }
  func.func @transform_2(%arg0: i32) -> (i32, i32) {
    %c0_i32 = arith.constant 0 : i32
    %c0_i32_0 = arith.constant 0 : i32
    %c0_i32_1 = arith.constant 0 : i32
    return %c0_i32, %c0_i32_0 : i32, i32
  }
  func.func @transform_3(%arg0: i32) -> (i32, i32) {
    %c0_i32 = arith.constant 0 : i32
    %c0_i32_0 = arith.constant 0 : i32
    %c0_i32_1 = arith.constant 0 : i32
    return %c0_i32, %c0_i32_0 : i32, i32
  }
  func.func @transform_4(%arg0: i32) -> (i32, i32) {
    %c0_i32 = arith.constant 0 : i32
    %c0_i32_0 = arith.constant 0 : i32
    %c0_i32_1 = arith.constant 0 : i32
    return %c0_i32, %c0_i32_0 : i32, i32
  }
  func.func @transform_5(%arg0: i32) -> (i32, i32) {
    %c0_i32 = arith.constant 0 : i32
    %c0_i32_0 = arith.constant 0 : i32
    %c0_i32_1 = arith.constant 0 : i32
    return %c0_i32, %c0_i32_0 : i32, i32
  }
  func.func @transform_6(%arg0: i32) -> (i32, i32) {
    %c0_i32 = arith.constant 0 : i32
    %c0_i32_0 = arith.constant 0 : i32
    %c0_i32_1 = arith.constant 0 : i32
    return %c0_i32, %c0_i32_0 : i32, i32
  }
  func.func @transform_7(%arg0: i32) -> (i32, i32) {
    %c0_i32 = arith.constant 0 : i32
    %c0_i32_0 = arith.constant 0 : i32
    %c0_i32_1 = arith.constant 0 : i32
    return %c0_i32, %c0_i32_0 : i32, i32
  }
  func.func @transform_8(%arg0: i32) -> (i32, i32) {
    %c0_i32 = arith.constant 0 : i32
    %c0_i32_0 = arith.constant 0 : i32
    %c0_i32_1 = arith.constant 0 : i32
    return %c0_i32, %c0_i32_0 : i32, i32
  }
  func.func @transform_9(%arg0: i32) -> (i32, i32) {
    %c0_i32 = arith.constant 0 : i32
    %c0_i32_0 = arith.constant 0 : i32
    %c0_i32_1 = arith.constant 0 : i32
    return %c0_i32, %c0_i32_0 : i32, i32
  }
  func.func @transform_10(%arg0: i32) -> (i32, i32) {
    %c0_i32 = arith.constant 0 : i32
    %c0_i32_0 = arith.constant 0 : i32
    return %c0_i32, %arg0 : i32, i32
  }
}

</mosaic_0001>

<llo_original>
// kernel: double_conv_block.1
$region0: #{double_conv_block.1}
  #allocation0 [shape = 'u32[]', space=smem, size = 0x4, offset = 0x4, fixed_abs, tag = 'smem constant byte address 0x4 - core index']
  #allocation1 [shape = 'u32[144,128]{1,0:T(1,128)}', space=vmem, size = 0x12000, scoped, tag = 'internal scratch']
  %s0 = inlined_call_operand.vmem [shape: f32[4,512], index: 0, kind: input, shape index: {}]
  %s1 = inlined_call_operand.vmem [shape: f32[9,512], index: 1, kind: input, shape index: {}]
  %s2 = inlined_call_operand.vmem [shape: f32[8,36], index: 2, kind: input, shape index: {}]
  %s3 = inlined_call_operand.vmem [shape: f32[8,1], index: 3, kind: input, shape index: {}]
  %s4 = inlined_call_operand.vmem [shape: f32[8,1], index: 4, kind: input, shape index: {}]
  %s5 = inlined_call_operand.vmem [shape: f32[8,1], index: 5, kind: input, shape index: {}]
  %s6 = inlined_call_operand.vmem [shape: f32[8,9], index: 6, kind: input, shape index: {}]
  %s7 = inlined_call_operand.vmem [shape: f32[8,1], index: 7, kind: input, shape index: {}]
  %s8 = inlined_call_operand.vmem [shape: f32[8,1], index: 8, kind: input, shape index: {}]
  %s9 = inlined_call_operand.vmem [shape: f32[8,1], index: 9, kind: input, shape index: {}]
  %s10 = inlined_call_operand.vmem [shape: f32[8,512], index: 10, kind: output, shape index: {}]
  %s11 = sld [smem:[#allocation0]]
  $region50: #{double_conv_block.1} parent=0
    _
  %s13 = ssub.s32 1, %s11
  %s14 = scalar_select 0, %s13, %s11
  // Predicated region
  $region2: #{double_conv_block.1} parent=0 // pred_check
    _
  $region3: #{double_conv_block.1} parent=0 // pred_check_branch
    %16 = sbr.rel (0) target = $region5
  $region4: #{double_conv_block.1} parent=0 // pred_region
    _
  $region5: #{double_conv_block.1} parent=0 // pred_fallthru
    _
  // Predicated region
  $region6: #{double_conv_block.1} parent=0 // pred_check
    _
  $region7: #{double_conv_block.1} parent=0 // pred_check_branch
    %18 = sbr.rel (0) target = $region9
  $region8: #{double_conv_block.1} parent=0 // pred_region
    _
  $region9: #{double_conv_block.1} parent=0 // pred_fallthru
    _
  // Predicated region
  $region10: #{double_conv_block.1} parent=0 // pred_check
    _
  $region11: #{double_conv_block.1} parent=0 // pred_check_branch
    %20 = sbr.rel (0) target = $region13
  $region12: #{double_conv_block.1} parent=0 // pred_region
    _
  $region13: #{double_conv_block.1} parent=0 // pred_fallthru
    _
  // Predicated region
  $region14: #{double_conv_block.1} parent=0 // pred_check
    _
  $region15: #{double_conv_block.1} parent=0 // pred_check_branch
    %22 = sbr.rel (0) target = $region17
  $region16: #{double_conv_block.1} parent=0 // pred_region
    _
  $region17: #{double_conv_block.1} parent=0 // pred_fallthru
    _
  // Predicated region
  $region18: #{double_conv_block.1} parent=0 // pred_check
    _
  $region19: #{double_conv_block.1} parent=0 // pred_check_branch
    %24 = sbr.rel (0) target = $region21
  $region20: #{double_conv_block.1} parent=0 // pred_region
    _
  $region21: #{double_conv_block.1} parent=0 // pred_fallthru
    _
  // Predicated region
  $region22: #{double_conv_block.1} parent=0 // pred_check
    _
  $region23: #{double_conv_block.1} parent=0 // pred_check_branch
    %26 = sbr.rel (0) target = $region25
  $region24: #{double_conv_block.1} parent=0 // pred_region
    _
  $region25: #{double_conv_block.1} parent=0 // pred_fallthru
    _
  // Predicated region
  $region26: #{double_conv_block.1} parent=0 // pred_check
    _
  $region27: #{double_conv_block.1} parent=0 // pred_check_branch
    %28 = sbr.rel (0) target = $region29
  $region28: #{double_conv_block.1} parent=0 // pred_region
    _
  $region29: #{double_conv_block.1} parent=0 // pred_fallthru
    _
  // Predicated region
  $region30: #{double_conv_block.1} parent=0 // pred_check
    _
  $region31: #{double_conv_block.1} parent=0 // pred_check_branch
    %30 = sbr.rel (0) target = $region33
  $region32: #{double_conv_block.1} parent=0 // pred_region
    _
  $region33: #{double_conv_block.1} parent=0 // pred_fallthru
    _
  // Predicated region
  $region34: #{double_conv_block.1} parent=0 // pred_check
    _
  $region35: #{double_conv_block.1} parent=0 // pred_check_branch
    %32 = sbr.rel (0) target = $region37
  $region36: #{double_conv_block.1} parent=0 // pred_region
    _
  $region37: #{double_conv_block.1} parent=0 // pred_fallthru
    _
  // Predicated region
  $region38: #{double_conv_block.1} parent=0 // pred_check
    _
  $region39: #{double_conv_block.1} parent=0 // pred_check_branch
    %34 = sbr.rel (0) target = $region41
  $region40: #{double_conv_block.1} parent=0 // pred_region
    _
  $region41: #{double_conv_block.1} parent=0 // pred_fallthru
    _
  %v35 = vld [vmem:[%s0] sm:$0xff]
  %v36 = vld [vmem:[%s0 + $0x8] sm:$0xff]
  %v37 = vld [vmem:[%s1] sm:$0xff]
  %v38 = vld [vmem:[%s1 + $0x8] sm:$0xff]
  %v39 = vld [vmem:[%s1 + $0x10] sm:$0xff]
  %v40 = vld [vmem:[%s1 + $0x18] sm:$0xff]
  %v41 = vld [vmem:[%s1 + $0x20] sm:$0x1]
  %v42 = vld [vmem:[%s1 + $0x28] sm:$0x1]
  %v43 = vld [vmem:[%s1 + $0x30] sm:$0x1]
  %v44 = vld [vmem:[%s1 + $0x38] sm:$0x1]
  %v46 = vcombine.high %v36, %v36
  %47 = vrot.lane.b32.xlu0 %v46, 17
  %v48 = vpop.permute.xlu0 %47
  %v51 = vcombine.high %v35, %v35
  %52 = vrot.lane.b32.xlu0 %v35, 17
  %v53 = vpop.permute.xlu0 %52
  %54 = vrot.lane.b32.xlu0 %v51, 17
  %v55 = vpop.permute.xlu0 %54
  %56 = vrot.lane.b32.xlu0 %v36, 17
  %v57 = vpop.permute.xlu0 %56
  %vm58 = vcmask 138240
  %v59 = vsel %vm58, %v53, %v55
  %v60 = vsel %vm58, %v55, %v57
  %v61 = vsel %vm58, %v57, %v48
  %v66 = vsel %vm58, %v48, %v53
  %v67 = vlaneseq
  %v68 = vshrl.u32 %v67, 7
  %v69 = vsub.s32 0, %v68
  %v70 = vrot.slane %v37, %v69
  %v71 = vlaneseq
  %v72 = vshrl.u32 %v71, 7
  %v73 = vsub.s32 0, %v72
  %v74 = vrot.slane %v38, %v73
  %v75 = vlaneseq
  %v76 = vshrl.u32 %v75, 7
  %v77 = vsub.s32 0, %v76
  %v78 = vrot.slane %v39, %v77
  %v79 = vlaneseq
  %v80 = vshrl.u32 %v79, 7
  %v81 = vsub.s32 0, %v80
  %v82 = vrot.slane %v40, %v81
  %v83 = vmul.f32 %v66, %v70
  %v84 = vmul.f32 %v59, %v74
  %v85 = vmul.f32 %v60, %v78
  %v86 = vmul.f32 %v61, %v82
  %87 = vrot.lane.b32.xlu0 %v46, 16
  %v88 = vpop.permute.xlu0 %87
  %90 = vrot.lane.b32.xlu0 %v35, 16
  %v91 = vpop.permute.xlu0 %90
  %92 = vrot.lane.b32.xlu0 %v51, 16
  %v93 = vpop.permute.xlu0 %92
  %94 = vrot.lane.b32.xlu0 %v36, 16
  %v95 = vpop.permute.xlu0 %94
  %vm96 = vcmask 130048
  %v97 = vsel %vm96, %v91, %v93
  %v98 = vsel %vm96, %v93, %v95
  %v99 = vsel %vm96, %v95, %v88
  %v104 = vsel %vm96, %v88, %v91
  %v105 = vlaneseq
  %v106 = vshrl.u32 %v105, 7
  %v107 = vsub.s32 1, %v106
  %v108 = vrot.slane %v37, %v107
  %v109 = vlaneseq
  %v110 = vshrl.u32 %v109, 7
  %v111 = vsub.s32 1, %v110
  %v112 = vrot.slane %v38, %v111
  %v113 = vlaneseq
  %v114 = vshrl.u32 %v113, 7
  %v115 = vsub.s32 1, %v114
  %v116 = vrot.slane %v39, %v115
  %v117 = vlaneseq
  %v118 = vshrl.u32 %v117, 7
  %v119 = vsub.s32 1, %v118
  %v120 = vrot.slane %v40, %v119
  %v121 = vmul.f32 %v104, %v108
  %v122 = vmul.f32 %v97, %v112
  %v123 = vmul.f32 %v98, %v116
  %v124 = vmul.f32 %v99, %v120
  %125 = vrot.lane.b32.xlu0 %v46, 15
  %v126 = vpop.permute.xlu0 %125
  %128 = vrot.lane.b32.xlu0 %v35, 15
  %v129 = vpop.permute.xlu0 %128
  %130 = vrot.lane.b32.xlu0 %v51, 15
  %v131 = vpop.permute.xlu0 %130
  %132 = vrot.lane.b32.xlu0 %v36, 15
  %v133 = vpop.permute.xlu0 %132
  %vm134 = vcmask 121856
  %v135 = vsel %vm134, %v129, %v131
  %v136 = vsel %vm134, %v131, %v133
  %v137 = vsel %vm134, %v133, %v126
  %v142 = vsel %vm134, %v126, %v129
  %v143 = vlaneseq
  %v144 = vshrl.u32 %v143, 7
  %v145 = vsub.s32 2, %v144
  %v146 = vrot.slane %v37, %v145
  %v147 = vlaneseq
  %v148 = vshrl.u32 %v147, 7
  %v149 = vsub.s32 2, %v148
  %v150 = vrot.slane %v38, %v149
  %v151 = vlaneseq
  %v152 = vshrl.u32 %v151, 7
  %v153 = vsub.s32 2, %v152
  %v154 = vrot.slane %v39, %v153
  %v155 = vlaneseq
  %v156 = vshrl.u32 %v155, 7
  %v157 = vsub.s32 2, %v156
  %v158 = vrot.slane %v40, %v157
  %v159 = vmul.f32 %v142, %v146
  %v160 = vmul.f32 %v135, %v150
  %v161 = vmul.f32 %v136, %v154
  %v162 = vmul.f32 %v137, %v158
  %163 = vrot.lane.b32.xlu0 %v46, 1
  %v164 = vpop.permute.xlu0 %163
  %166 = vrot.lane.b32.xlu0 %v35, 1
  %v167 = vpop.permute.xlu0 %166
  %168 = vrot.lane.b32.xlu0 %v51, 1
  %v169 = vpop.permute.xlu0 %168
  %170 = vrot.lane.b32.xlu0 %v36, 1
  %v171 = vpop.permute.xlu0 %170
  %vm172 = vcmask 7168
  %v173 = vsel %vm172, %v167, %v169
  %v174 = vsel %vm172, %v169, %v171
  %v175 = vsel %vm172, %v171, %v164
  %v180 = vsel %vm172, %v164, %v167
  %v181 = vlaneseq
  %v182 = vshrl.u32 %v181, 7
  %v183 = vsub.s32 3, %v182
  %v184 = vrot.slane %v37, %v183
  %v185 = vlaneseq
  %v186 = vshrl.u32 %v185, 7
  %v187 = vsub.s32 3, %v186
  %v188 = vrot.slane %v38, %v187
  %v189 = vlaneseq
  %v190 = vshrl.u32 %v189, 7
  %v191 = vsub.s32 3, %v190
  %v192 = vrot.slane %v39, %v191
  %v193 = vlaneseq
  %v194 = vshrl.u32 %v193, 7
  %v195 = vsub.s32 3, %v194
  %v196 = vrot.slane %v40, %v195
  %v197 = vmul.f32 %v180, %v184
  %v198 = vmul.f32 %v173, %v188
  %v199 = vmul.f32 %v174, %v192
  %v200 = vmul.f32 %v175, %v196
  %v201 = vlaneseq
  %v202 = vshrl.u32 %v201, 7
  %v203 = vsub.s32 4, %v202
  %v204 = vrot.slane %v37, %v203
  %v205 = vlaneseq
  %v206 = vshrl.u32 %v205, 7
  %v207 = vsub.s32 4, %v206
  %v208 = vrot.slane %v38, %v207
  %v209 = vlaneseq
  %v210 = vshrl.u32 %v209, 7
  %v211 = vsub.s32 4, %v210
  %v212 = vrot.slane %v39, %v211
  %v213 = vlaneseq
  %v214 = vshrl.u32 %v213, 7
  %v215 = vsub.s32 4, %v214
  %v216 = vrot.slane %v40, %v215
  %v221 = vcombine.low %v204, %v208
  %v222 = vcombine.low %v212, %v216
  %v225 = vmul.f32 %v35, %v221
  %v226 = vmul.f32 %v36, %v222
  %227 = vrot.lane.b32.xlu0 %v35, 127
  %v228 = vpop.permute.xlu0 %227
  %229 = vrot.lane.b32.xlu0 %v51, 127
  %v230 = vpop.permute.xlu0 %229
  %231 = vrot.lane.b32.xlu0 %v36, 127
  %v232 = vpop.permute.xlu0 %231
  %233 = vrot.lane.b32.xlu0 %v46, 127
  %v234 = vpop.permute.xlu0 %233
  %vm235 = vcmask 1039360
  %v236 = vsel %vm235, %v228, %v230
  %v237 = vsel %vm235, %v230, %v232
  %v238 = vsel %vm235, %v232, %v234
  %v244 = vsel %vm235, %v234, %v228
  %v245 = vlaneseq
  %v246 = vshrl.u32 %v245, 7
  %v247 = vsub.s32 5, %v246
  %v248 = vrot.slane %v37, %v247
  %v249 = vlaneseq
  %v250 = vshrl.u32 %v249, 7
  %v251 = vsub.s32 5, %v250
  %v252 = vrot.slane %v38, %v251
  %v253 = vlaneseq
  %v254 = vshrl.u32 %v253, 7
  %v255 = vsub.s32 5, %v254
  %v256 = vrot.slane %v39, %v255
  %v257 = vlaneseq
  %v258 = vshrl.u32 %v257, 7
  %v259 = vsub.s32 5, %v258
  %v260 = vrot.slane %v40, %v259
  %v261 = vmul.f32 %v236, %v248
  %v262 = vmul.f32 %v237, %v252
  %v263 = vmul.f32 %v238, %v256
  %v264 = vmul.f32 %v244, %v260
  %265 = vrot.lane.b32.xlu0 %v35, 113
  %v266 = vpop.permute.xlu0 %265
  %267 = vrot.lane.b32.xlu0 %v51, 113
  %v268 = vpop.permute.xlu0 %267
  %269 = vrot.lane.b32.xlu0 %v36, 113
  %v270 = vpop.permute.xlu0 %269
  %271 = vrot.lane.b32.xlu0 %v46, 113
  %v272 = vpop.permute.xlu0 %271
  %vm273 = vcmask 924672
  %v274 = vsel %vm273, %v266, %v268
  %v275 = vsel %vm273, %v268, %v270
  %v276 = vsel %vm273, %v270, %v272
  %v282 = vsel %vm273, %v272, %v266
  %v283 = vlaneseq
  %v284 = vshrl.u32 %v283, 7
  %v285 = vsub.s32 6, %v284
  %v286 = vrot.slane %v37, %v285
  %v287 = vlaneseq
  %v288 = vshrl.u32 %v287, 7
  %v289 = vsub.s32 6, %v288
  %v290 = vrot.slane %v38, %v289
  %v291 = vlaneseq
  %v292 = vshrl.u32 %v291, 7
  %v293 = vsub.s32 6, %v292
  %v294 = vrot.slane %v39, %v293
  %v295 = vlaneseq
  %v296 = vshrl.u32 %v295, 7
  %v297 = vsub.s32 6, %v296
  %v298 = vrot.slane %v40, %v297
  %v299 = vmul.f32 %v274, %v286
  %v300 = vmul.f32 %v275, %v290
  %v301 = vmul.f32 %v276, %v294
  %v302 = vmul.f32 %v282, %v298
  %303 = vrot.lane.b32.xlu0 %v35, 112
  %v304 = vpop.permute.xlu0 %303
  %305 = vrot.lane.b32.xlu0 %v51, 112
  %v306 = vpop.permute.xlu0 %305
  %307 = vrot.lane.b32.xlu0 %v36, 112
  %v308 = vpop.permute.xlu0 %307
  %309 = vrot.lane.b32.xlu0 %v46, 112
  %v310 = vpop.permute.xlu0 %309
  %vm311 = vcmask 916480
  %v312 = vsel %vm311, %v304, %v306
  %v313 = vsel %vm311, %v306, %v308
  %v314 = vsel %vm311, %v308, %v310
  %v320 = vsel %vm311, %v310, %v304
  %v321 = vlaneseq
  %v322 = vshrl.u32 %v321, 7
  %v323 = vsub.s32 7, %v322
  %v324 = vrot.slane %v37, %v323
  %v325 = vlaneseq
  %v326 = vshrl.u32 %v325, 7
  %v327 = vsub.s32 7, %v326
  %v328 = vrot.slane %v38, %v327
  %v329 = vlaneseq
  %v330 = vshrl.u32 %v329, 7
  %v331 = vsub.s32 7, %v330
  %v332 = vrot.slane %v39, %v331
  %v333 = vlaneseq
  %v334 = vshrl.u32 %v333, 7
  %v335 = vsub.s32 7, %v334
  %v336 = vrot.slane %v40, %v335
  %v337 = vmul.f32 %v312, %v324
  %v338 = vmul.f32 %v313, %v328
  %v339 = vmul.f32 %v314, %v332
  %v340 = vmul.f32 %v320, %v336
  %341 = vrot.lane.b32.xlu0 %v35, 111
  %v342 = vpop.permute.xlu0 %341
  %343 = vrot.lane.b32.xlu0 %v51, 111
  %v344 = vpop.permute.xlu0 %343
  %345 = vrot.lane.b32.xlu0 %v36, 111
  %v346 = vpop.permute.xlu0 %345
  %347 = vrot.lane.b32.xlu0 %v46, 111
  %v348 = vpop.permute.xlu0 %347
  %vm349 = vcmask 908288
  %v350 = vsel %vm349, %v342, %v344
  %v351 = vsel %vm349, %v344, %v346
  %v352 = vsel %vm349, %v346, %v348
  %v358 = vsel %vm349, %v348, %v342
  %v359 = vlaneseq
  %v360 = vshrl.u32 %v359, 7
  %v361 = vsub.s32 0, %v360
  %v362 = vrot.slane %v41, %v361
  %v363 = vlaneseq
  %v364 = vshrl.u32 %v363, 7
  %v365 = vsub.s32 0, %v364
  %v366 = vrot.slane %v42, %v365
  %v367 = vlaneseq
  %v368 = vshrl.u32 %v367, 7
  %v369 = vsub.s32 0, %v368
  %v370 = vrot.slane %v43, %v369
  %v371 = vlaneseq
  %v372 = vshrl.u32 %v371, 7
  %v373 = vsub.s32 0, %v372
  %v374 = vrot.slane %v44, %v373
  %v375 = vmul.f32 %v350, %v362
  %v376 = vmul.f32 %v351, %v366
  %v377 = vmul.f32 %v352, %v370
  %v378 = vmul.f32 %v358, %v374
  %v383 = vrot.slane %v121, 4
  %v384 = vrot.slane %v122, 4
  %v385 = vrot.slane %v123, 4
  %v386 = vrot.slane %v124, 4
  %v395 = vrot.slane %v197, 4
  %v396 = vrot.slane %v198, 4
  %v397 = vrot.slane %v199, 4
  %v398 = vrot.slane %v200, 4
  %v405 = vcombine.high %v225, %v225
  %v406 = vcombine.high %v226, %v226
  %v413 = vrot.slane %v261, 4
  %v414 = vrot.slane %v262, 4
  %v415 = vrot.slane %v263, 4
  %v416 = vrot.slane %v264, 4
  %v425 = vrot.slane %v337, 4
  %v426 = vrot.slane %v338, 4
  %v427 = vrot.slane %v339, 4
  %v428 = vrot.slane %v340, 4
  %vm433 = vcmask 1043456
  %v434 = vsel %vm433, %v83, %v383
  %v435 = vsel %vm433, %v84, %v384
  %v436 = vsel %vm433, %v85, %v385
  %v437 = vsel %vm433, %v86, %v386
  %v438 = vsel %vm433, %v159, %v395
  %v439 = vsel %vm433, %v160, %v396
  %v440 = vsel %vm433, %v161, %v397
  %v441 = vsel %vm433, %v162, %v398
  %v442 = vsel %vm433, %v225, %v413
  %v443 = vsel %vm433, %v405, %v414
  %v444 = vsel %vm433, %v226, %v415
  %v445 = vsel %vm433, %v406, %v416
  %v446 = vsel %vm433, %v299, %v425
  %v447 = vsel %vm433, %v300, %v426
  %v448 = vsel %vm433, %v301, %v427
  %v449 = vsel %vm433, %v302, %v428
  %v450 = vld [vmem:[%s2] sm:$0xff]
  %v451 = vld [vmem:[%s3] sm:$0xff]
  %453 = vset.pattern.permute.xlu0 0
  %454 = vperm.xlu0 %453, %v451
  %v455 = vpop.permute.xlu0 %454
  %vm457 = vcmask 293888
  %v459 = vsel %vm457, %v450, 0
  %v462 = vsel %vm433, %v375, 0
  %v465 = vsel %vm433, %v376, 0
  %v468 = vsel %vm433, %v377, 0
  %v471 = vsel %vm433, %v378, 0
  %473 = vmatprep.subr.mxu0 0.0
  %474 = vmatpush1.msra.mxu0 0.0
  %475 = vmatprep.subr.mxu0 0.0
  %476 = vmatpush1.msra.mxu0 0.0
  %477 = vmatprep.subr.mxu0 0.0
  %478 = vmatpush1.msra.mxu0 0.0
  %479 = vmatprep.subr.mxu0 0.0
  %480 = vmatpush1.msra.mxu0 0.0
  %481 = vmatprep.subr.mxu0 0.0
  %482 = vmatpush1.msra.mxu0 0.0
  %483 = vmatprep.subr.mxu0 0.0
  %484 = vmatpush1.msra.mxu0 0.0
  %485 = vmatprep.subr.mxu0 0.0
  %486 = vmatpush1.msra.mxu0 0.0
  %487 = vmatprep.subr.mxu0 0.0
  %488 = vmatpush1.msra.mxu0 0.0
  %489 = vmatprep.subr.mxu0 0.0
  %490 = vmatpush1.msra.mxu0 0.0
  %491 = vmatprep.subr.mxu0 0.0
  %492 = vmatpush1.msra.mxu0 0.0
  %493 = vmatprep.subr.mxu0 0.0
  %494 = vmatpush1.msra.mxu0 0.0
  %495 = vmatprep.subr.mxu0 %v465
  %496 = vmatpush1.msra.mxu0 %v462
  %497 = vmatprep.subr.mxu0 %v447
  %498 = vmatpush1.msra.mxu0 %v446
  %499 = vmatprep.subr.mxu0 %v443
  %500 = vmatpush1.msra.mxu0 %v442
  %501 = vmatprep.subr.mxu0 %v439
  %502 = vmatpush1.msra.mxu0 %v438
  %503 = vmatprep.subr.mxu0 %v435
  %504 = vmatpush1.msra.mxu0 %v434
  %505 = vmatprep.subr.mxu0 0.0
  %506 = vmatpush2.msra.mxu0 0.0
  %507 = vmatprep.subr.mxu0 0.0
  %508 = vmatpush2.msra.mxu0 0.0
  %509 = vmatprep.subr.mxu0 0.0
  %510 = vmatpush2.msra.mxu0 0.0
  %511 = vmatprep.subr.mxu0 0.0
  %512 = vmatpush2.msra.mxu0 0.0
  %513 = vmatprep.subr.mxu0 0.0
  %514 = vmatpush2.msra.mxu0 0.0
  %515 = vmatprep.subr.mxu0 0.0
  %516 = vmatpush2.msra.mxu0 0.0
  %517 = vmatprep.subr.mxu0 0.0
  %518 = vmatpush2.msra.mxu0 0.0
  %519 = vmatprep.subr.mxu0 0.0
  %520 = vmatpush2.msra.mxu0 0.0
  %521 = vmatprep.subr.mxu0 0.0
  %522 = vmatpush2.msra.mxu0 0.0
  %523 = vmatprep.subr.mxu0 0.0
  %524 = vmatpush2.msra.mxu0 0.0
  %525 = vmatprep.subr.mxu0 0.0
  %526 = vmatpush2.msra.mxu0 0.0
  %527 = vmatprep.subr.mxu0 0.0
  %528 = vmatpush2.msra.mxu0 0.0
  %529 = vmatprep.subr.mxu0 0.0
  %530 = vmatpush2.msra.mxu0 0.0
  %531 = vmatprep.subr.mxu0 0.0
  %532 = vmatpush2.msra.mxu0 0.0
  %533 = vmatprep.subr.mxu0 0.0
  %534 = vmatpush2.msra.mxu0 0.0
  %535 = vmatprep.subr.mxu0 0.0
  %536 = vmatpush2.msra.mxu0 0.0
  %537 = vmatprep.mubr.f32.mxu0 0.0
  %538 = vmatmul.mubr.f32.gmra.mxu0 %v459
  %v539 = vpop.f32.mrf.mxu0
  %v540 = vadd.f32 %v455, %v539
  %v541 = vpop.f32.mrf.mxu0
  %v542 = vadd.f32 %v455, %v541
  %543 = vdwg.mxu0
  %544 = vmatprep.subr.mxu0 0.0
  %545 = vmatpush1.msra.mxu0 0.0
  %546 = vmatprep.subr.mxu0 0.0
  %547 = vmatpush1.msra.mxu0 0.0
  %548 = vmatprep.subr.mxu0 0.0
  %549 = vmatpush1.msra.mxu0 0.0
  %550 = vmatprep.subr.mxu0 0.0
  %551 = vmatpush1.msra.mxu0 0.0
  %552 = vmatprep.subr.mxu0 0.0
  %553 = vmatpush1.msra.mxu0 0.0
  %554 = vmatprep.subr.mxu0 0.0
  %555 = vmatpush1.msra.mxu0 0.0
  %556 = vmatprep.subr.mxu0 0.0
  %557 = vmatpush1.msra.mxu0 0.0
  %558 = vmatprep.subr.mxu0 0.0
  %559 = vmatpush1.msra.mxu0 0.0
  %560 = vmatprep.subr.mxu0 0.0
  %561 = vmatpush1.msra.mxu0 0.0
  %562 = vmatprep.subr.mxu0 0.0
  %563 = vmatpush1.msra.mxu0 0.0
  %564 = vmatprep.subr.mxu0 0.0
  %565 = vmatpush1.msra.mxu0 0.0
  %566 = vmatprep.subr.mxu0 %v471
  %567 = vmatpush1.msra.mxu0 %v468
  %568 = vmatprep.subr.mxu0 %v449
  %569 = vmatpush1.msra.mxu0 %v448
  %570 = vmatprep.subr.mxu0 %v445
  %571 = vmatpush1.msra.mxu0 %v444
  %572 = vmatprep.subr.mxu0 %v441
  %573 = vmatpush1.msra.mxu0 %v440
  %574 = vmatprep.subr.mxu0 %v437
  %575 = vmatpush1.msra.mxu0 %v436
  %576 = vmatprep.subr.mxu0 0.0
  %577 = vmatpush2.msra.mxu0 0.0
  %578 = vmatprep.subr.mxu0 0.0
  %579 = vmatpush2.msra.mxu0 0.0
  %580 = vmatprep.subr.mxu0 0.0
  %581 = vmatpush2.msra.mxu0 0.0
  %582 = vmatprep.subr.mxu0 0.0
  %583 = vmatpush2.msra.mxu0 0.0
  %584 = vmatprep.subr.mxu0 0.0
  %585 = vmatpush2.msra.mxu0 0.0
  %586 = vmatprep.subr.mxu0 0.0
  %587 = vmatpush2.msra.mxu0 0.0
  %588 = vmatprep.subr.mxu0 0.0
  %589 = vmatpush2.msra.mxu0 0.0
  %590 = vmatprep.subr.mxu0 0.0
  %591 = vmatpush2.msra.mxu0 0.0
  %592 = vmatprep.subr.mxu0 0.0
  %593 = vmatpush2.msra.mxu0 0.0
  %594 = vmatprep.subr.mxu0 0.0
  %595 = vmatpush2.msra.mxu0 0.0
  %596 = vmatprep.subr.mxu0 0.0
  %597 = vmatpush2.msra.mxu0 0.0
  %598 = vmatprep.subr.mxu0 0.0
  %599 = vmatpush2.msra.mxu0 0.0
  %600 = vmatprep.subr.mxu0 0.0
  %601 = vmatpush2.msra.mxu0 0.0
  %602 = vmatprep.subr.mxu0 0.0
  %603 = vmatpush2.msra.mxu0 0.0
  %604 = vmatprep.subr.mxu0 0.0
  %605 = vmatpush2.msra.mxu0 0.0
  %606 = vmatprep.subr.mxu0 0.0
  %607 = vmatpush2.msra.mxu0 0.0
  %608 = vmatprep.mubr.f32.mxu0 0.0
  %609 = vmatmul.mubr.f32.gmra.mxu0 %v459
  %v610 = vpop.f32.mrf.mxu0
  %v611 = vadd.f32 %v455, %v610
  %v612 = vpop.f32.mrf.mxu0
  %v613 = vadd.f32 %v455, %v612
  %614 = vdwg.mxu0
  %v615 = vmax.f32 %v540, 0.0
  %v616 = vmax.f32 %v542, 0.0
  %v617 = vmax.f32 %v611, 0.0
  %v618 = vmax.f32 %v613, 0.0
  %v619 = vld [vmem:[%s4] sm:$0xff]
  %621 = vset.pattern.permute.xlu0 0
  %622 = vperm.xlu0 %621, %v619
  %v623 = vpop.permute.xlu0 %622
  %v625 = vmul.f32 %v615, %v623
  %v626 = vmul.f32 %v616, %v623
  %v627 = vmul.f32 %v617, %v623
  %v628 = vmul.f32 %v618, %v623
  %v629 = vld [vmem:[%s5] sm:$0xff]
  %631 = vset.pattern.permute.xlu0 0
  %632 = vperm.xlu0 %631, %v629
  %v633 = vpop.permute.xlu0 %632
  %v635 = vadd.f32 %v625, %v633
  %v636 = vadd.f32 %v626, %v633
  %v637 = vadd.f32 %v627, %v633
  %v638 = vadd.f32 %v628, %v633
  %v639 = vld [vmem:[%s6] sm:$0xff]
  %641 = vrot.lane.b32.xlu0 %v638, 17
  %v642 = vpop.permute.xlu0 %641
  %647 = vrot.lane.b32.xlu0 %v635, 17
  %v648 = vpop.permute.xlu0 %647
  %649 = vrot.lane.b32.xlu0 %v636, 17
  %v650 = vpop.permute.xlu0 %649
  %651 = vrot.lane.b32.xlu0 %v637, 17
  %v652 = vpop.permute.xlu0 %651
  %v653 = vsel %vm58, %v648, %v650
  %v654 = vsel %vm58, %v650, %v652
  %v655 = vsel %vm58, %v652, %v642
  %v660 = vsel %vm58, %v642, %v648
  %v661 = vmul.f32 %v660, %v70
  %v662 = vmul.f32 %v653, %v74
  %v663 = vmul.f32 %v654, %v78
  %v664 = vmul.f32 %v655, %v82
  %666 = vset.pattern.permute.xlu0 0
  %667 = vperm.xlu0 %666, %v639
  %v668 = vpop.permute.xlu0 %667
  %v670 = vmul.f32 %v668, %v661
  %v671 = vmul.f32 %v668, %v662
  %v672 = vmul.f32 %v668, %v663
  %v673 = vmul.f32 %v668, %v664
  %v674 = vadd.f32 %v670, 0.0
  %v675 = vadd.f32 %v671, 0.0
  %v676 = vadd.f32 %v672, 0.0
  %v677 = vadd.f32 %v673, 0.0
  %678 = vrot.lane.b32.xlu0 %v638, 16
  %v679 = vpop.permute.xlu0 %678
  %681 = vrot.lane.b32.xlu0 %v635, 16
  %v682 = vpop.permute.xlu0 %681
  %683 = vrot.lane.b32.xlu0 %v636, 16
  %v684 = vpop.permute.xlu0 %683
  %685 = vrot.lane.b32.xlu0 %v637, 16
  %v686 = vpop.permute.xlu0 %685
  %v687 = vsel %vm96, %v682, %v684
  %v688 = vsel %vm96, %v684, %v686
  %v689 = vsel %vm96, %v686, %v679
  %v694 = vsel %vm96, %v679, %v682
  %v695 = vmul.f32 %v694, %v108
  %v696 = vmul.f32 %v687, %v112
  %v697 = vmul.f32 %v688, %v116
  %v698 = vmul.f32 %v689, %v120
  %699 = vset.pattern.permute.xlu0 1
  %700 = vperm.xlu0 %699, %v639
  %v701 = vpop.permute.xlu0 %700
  %v703 = vmul.f32 %v701, %v695
  %v704 = vmul.f32 %v701, %v696
  %v705 = vmul.f32 %v701, %v697
  %v706 = vmul.f32 %v701, %v698
  %v707 = vadd.f32 %v674, %v703
  %v708 = vadd.f32 %v675, %v704
  %v709 = vadd.f32 %v676, %v705
  %v710 = vadd.f32 %v677, %v706
  %711 = vrot.lane.b32.xlu0 %v638, 15
  %v712 = vpop.permute.xlu0 %711
  %714 = vrot.lane.b32.xlu0 %v635, 15
  %v715 = vpop.permute.xlu0 %714
  %716 = vrot.lane.b32.xlu0 %v636, 15
  %v717 = vpop.permute.xlu0 %716
  %718 = vrot.lane.b32.xlu0 %v637, 15
  %v719 = vpop.permute.xlu0 %718
  %v720 = vsel %vm134, %v715, %v717
  %v721 = vsel %vm134, %v717, %v719
  %v722 = vsel %vm134, %v719, %v712
  %v727 = vsel %vm134, %v712, %v715
  %v728 = vmul.f32 %v727, %v146
  %v729 = vmul.f32 %v720, %v150
  %v730 = vmul.f32 %v721, %v154
  %v731 = vmul.f32 %v722, %v158
  %732 = vset.pattern.permute.xlu0 2
  %733 = vperm.xlu0 %732, %v639
  %v734 = vpop.permute.xlu0 %733
  %v736 = vmul.f32 %v734, %v728
  %v737 = vmul.f32 %v734, %v729
  %v738 = vmul.f32 %v734, %v730
  %v739 = vmul.f32 %v734, %v731
  %v740 = vadd.f32 %v707, %v736
  %v741 = vadd.f32 %v708, %v737
  %v742 = vadd.f32 %v709, %v738
  %v743 = vadd.f32 %v710, %v739
  %744 = vrot.lane.b32.xlu0 %v638, 1
  %v745 = vpop.permute.xlu0 %744
  %747 = vrot.lane.b32.xlu0 %v635, 1
  %v748 = vpop.permute.xlu0 %747
  %749 = vrot.lane.b32.xlu0 %v636, 1
  %v750 = vpop.permute.xlu0 %749
  %751 = vrot.lane.b32.xlu0 %v637, 1
  %v752 = vpop.permute.xlu0 %751
  %v753 = vsel %vm172, %v748, %v750
  %v754 = vsel %vm172, %v750, %v752
  %v755 = vsel %vm172, %v752, %v745
  %v760 = vsel %vm172, %v745, %v748
  %v761 = vmul.f32 %v760, %v184
  %v762 = vmul.f32 %v753, %v188
  %v763 = vmul.f32 %v754, %v192
  %v764 = vmul.f32 %v755, %v196
  %765 = vset.pattern.permute.xlu0 3
  %766 = vperm.xlu0 %765, %v639
  %v767 = vpop.permute.xlu0 %766
  %v769 = vmul.f32 %v767, %v761
  %v770 = vmul.f32 %v767, %v762
  %v771 = vmul.f32 %v767, %v763
  %v772 = vmul.f32 %v767, %v764
  %v773 = vadd.f32 %v740, %v769
  %v774 = vadd.f32 %v741, %v770
  %v775 = vadd.f32 %v742, %v771
  %v776 = vadd.f32 %v743, %v772
  %v777 = vmul.f32 %v635, %v204
  %v778 = vmul.f32 %v636, %v208
  %v779 = vmul.f32 %v637, %v212
  %v780 = vmul.f32 %v638, %v216
  %781 = vset.pattern.permute.xlu0 4
  %782 = vperm.xlu0 %781, %v639
  %v783 = vpop.permute.xlu0 %782
  %v785 = vmul.f32 %v783, %v777
  %v786 = vmul.f32 %v783, %v778
  %v787 = vmul.f32 %v783, %v779
  %v788 = vmul.f32 %v783, %v780
  %v789 = vadd.f32 %v773, %v785
  %v790 = vadd.f32 %v774, %v786
  %v791 = vadd.f32 %v775, %v787
  %v792 = vadd.f32 %v776, %v788
  %793 = vrot.lane.b32.xlu0 %v635, 127
  %v794 = vpop.permute.xlu0 %793
  %795 = vrot.lane.b32.xlu0 %v636, 127
  %v796 = vpop.permute.xlu0 %795
  %797 = vrot.lane.b32.xlu0 %v637, 127
  %v798 = vpop.permute.xlu0 %797
  %799 = vrot.lane.b32.xlu0 %v638, 127
  %v800 = vpop.permute.xlu0 %799
  %v801 = vsel %vm235, %v794, %v796
  %v802 = vsel %vm235, %v796, %v798
  %v803 = vsel %vm235, %v798, %v800
  %v809 = vsel %vm235, %v800, %v794
  %v810 = vmul.f32 %v801, %v248
  %v811 = vmul.f32 %v802, %v252
  %v812 = vmul.f32 %v803, %v256
  %v813 = vmul.f32 %v809, %v260
  %814 = vset.pattern.permute.xlu0 5
  %815 = vperm.xlu0 %814, %v639
  %v816 = vpop.permute.xlu0 %815
  %v818 = vmul.f32 %v816, %v810
  %v819 = vmul.f32 %v816, %v811
  %v820 = vmul.f32 %v816, %v812
  %v821 = vmul.f32 %v816, %v813
  %v822 = vadd.f32 %v789, %v818
  %v823 = vadd.f32 %v790, %v819
  %v824 = vadd.f32 %v791, %v820
  %v825 = vadd.f32 %v792, %v821
  %826 = vrot.lane.b32.xlu0 %v635, 113
  %v827 = vpop.permute.xlu0 %826
  %828 = vrot.lane.b32.xlu0 %v636, 113
  %v829 = vpop.permute.xlu0 %828
  %830 = vrot.lane.b32.xlu0 %v637, 113
  %v831 = vpop.permute.xlu0 %830
  %832 = vrot.lane.b32.xlu0 %v638, 113
  %v833 = vpop.permute.xlu0 %832
  %v834 = vsel %vm273, %v827, %v829
  %v835 = vsel %vm273, %v829, %v831
  %v836 = vsel %vm273, %v831, %v833
  %v842 = vsel %vm273, %v833, %v827
  %v843 = vmul.f32 %v834, %v286
  %v844 = vmul.f32 %v835, %v290
  %v845 = vmul.f32 %v836, %v294
  %v846 = vmul.f32 %v842, %v298
  %847 = vset.pattern.permute.xlu0 6
  %848 = vperm.xlu0 %847, %v639
  %v849 = vpop.permute.xlu0 %848
  %v851 = vmul.f32 %v849, %v843
  %v852 = vmul.f32 %v849, %v844
  %v853 = vmul.f32 %v849, %v845
  %v854 = vmul.f32 %v849, %v846
  %v855 = vadd.f32 %v822, %v851
  %v856 = vadd.f32 %v823, %v852
  %v857 = vadd.f32 %v824, %v853
  %v858 = vadd.f32 %v825, %v854
  %859 = vrot.lane.b32.xlu0 %v635, 112
  %v860 = vpop.permute.xlu0 %859
  %861 = vrot.lane.b32.xlu0 %v636, 112
  %v862 = vpop.permute.xlu0 %861
  %863 = vrot.lane.b32.xlu0 %v637, 112
  %v864 = vpop.permute.xlu0 %863
  %865 = vrot.lane.b32.xlu0 %v638, 112
  %v866 = vpop.permute.xlu0 %865
  %v867 = vsel %vm311, %v860, %v862
  %v868 = vsel %vm311, %v862, %v864
  %v869 = vsel %vm311, %v864, %v866
  %v875 = vsel %vm311, %v866, %v860
  %v876 = vmul.f32 %v867, %v324
  %v877 = vmul.f32 %v868, %v328
  %v878 = vmul.f32 %v869, %v332
  %v879 = vmul.f32 %v875, %v336
  %880 = vset.pattern.permute.xlu0 7
  %881 = vperm.xlu0 %880, %v639
  %v882 = vpop.permute.xlu0 %881
  %v884 = vmul.f32 %v882, %v876
  %v885 = vmul.f32 %v882, %v877
  %v886 = vmul.f32 %v882, %v878
  %v887 = vmul.f32 %v882, %v879
  %v888 = vadd.f32 %v855, %v884
  %v889 = vadd.f32 %v856, %v885
  %v890 = vadd.f32 %v857, %v886
  %v891 = vadd.f32 %v858, %v887
  %892 = vrot.lane.b32.xlu0 %v635, 111
  %v893 = vpop.permute.xlu0 %892
  %894 = vrot.lane.b32.xlu0 %v636, 111
  %v895 = vpop.permute.xlu0 %894
  %896 = vrot.lane.b32.xlu0 %v637, 111
  %v897 = vpop.permute.xlu0 %896
  %898 = vrot.lane.b32.xlu0 %v638, 111
  %v899 = vpop.permute.xlu0 %898
  %v900 = vsel %vm349, %v893, %v895
  %v901 = vsel %vm349, %v895, %v897
  %v902 = vsel %vm349, %v897, %v899
  %v908 = vsel %vm349, %v899, %v893
  %v909 = vmul.f32 %v900, %v362
  %v910 = vmul.f32 %v901, %v366
  %v911 = vmul.f32 %v902, %v370
  %v912 = vmul.f32 %v908, %v374
  %913 = vset.pattern.permute.xlu0 8
  %914 = vperm.xlu0 %913, %v639
  %v915 = vpop.permute.xlu0 %914
  %v917 = vmul.f32 %v915, %v909
  %v918 = vmul.f32 %v915, %v910
  %v919 = vmul.f32 %v915, %v911
  %v920 = vmul.f32 %v915, %v912
  %v921 = vadd.f32 %v888, %v917
  %v922 = vadd.f32 %v889, %v918
  %v923 = vadd.f32 %v890, %v919
  %v924 = vadd.f32 %v891, %v920
  %v925 = vld [vmem:[%s7] sm:$0xff]
  %927 = vset.pattern.permute.xlu0 0
  %928 = vperm.xlu0 %927, %v925
  %v929 = vpop.permute.xlu0 %928
  %v931 = vadd.f32 %v921, %v929
  %v932 = vadd.f32 %v922, %v929
  %v933 = vadd.f32 %v923, %v929
  %v934 = vadd.f32 %v924, %v929
  %v935 = vmax.f32 %v931, 0.0
  %v936 = vmax.f32 %v932, 0.0
  %v937 = vmax.f32 %v933, 0.0
  %v938 = vmax.f32 %v934, 0.0
  %v939 = vld [vmem:[%s8] sm:$0xff]
  %941 = vset.pattern.permute.xlu0 0
  %942 = vperm.xlu0 %941, %v939
  %v943 = vpop.permute.xlu0 %942
  %v945 = vmul.f32 %v935, %v943
  %v946 = vmul.f32 %v936, %v943
  %v947 = vmul.f32 %v937, %v943
  %v948 = vmul.f32 %v938, %v943
  %v949 = vld [vmem:[%s9] sm:$0xff]
  %951 = vset.pattern.permute.xlu0 0
  %952 = vperm.xlu0 %951, %v949
  %v953 = vpop.permute.xlu0 %952
  %v955 = vadd.f32 %v945, %v953
  %v956 = vadd.f32 %v946, %v953
  %v957 = vadd.f32 %v947, %v953
  %v958 = vadd.f32 %v948, %v953
  %959 = vst [vmem:[%s10] sm:$0xff] %v955
  %960 = vst [vmem:[%s10 + $0x8] sm:$0xff] %v956
  %961 = vst [vmem:[%s10 + $0x10] sm:$0xff] %v957
  %962 = vst [vmem:[%s10 + $0x18] sm:$0xff] %v958
  // Predicated region
  $region42: #{double_conv_block.1} parent=0 // pred_check
    _
  $region43: #{double_conv_block.1} parent=0 // pred_check_branch
    %964 = sbr.rel (0) target = $region45
  $region44: #{double_conv_block.1} parent=0 // pred_region
    _
  $region45: #{double_conv_block.1} parent=0 // pred_fallthru
    _
  // Predicated region
  $region46: #{double_conv_block.1} parent=0 // pred_check
    _
  $region47: #{double_conv_block.1} parent=0 // pred_check_branch
    %966 = sbr.rel (0) target = $region49
  $region48: #{double_conv_block.1} parent=0 // pred_region
    _
  $region49: #{double_conv_block.1} parent=0 // pred_fallthru
    _

</llo_original>
